<compile_context>
chip_gen: v7x
topology: tpu7x:2x2x1
jax: 0.10.0
libtpu: 0.0.40
codegen_flags: <defaults>
</compile_context>

<pallas_src>
import math

import jax
import jax.numpy as jnp
import numpy as np
from jax.experimental import pallas as pl
from jax.experimental.pallas import tpu as pltpu

_MiB = 1024 * 1024


def _round_up(x, m):
    return ((x + m - 1) // m) * m


# ---------------------------------------------------------------------------
# Pass 1:  acc = L @ F (K-tiled, f32 accumulate)
#          packed = [ acc + Fs | acc * F ]   (bf16, lane-dense 2*inFp columns)
#          with Fs = diag(selfLoop) * F  (precomputed in the wrapper).
# ---------------------------------------------------------------------------
def _pass1_kernel(l_ref, fk_ref, frow_ref, fsrow_ref, packed_ref, acc_ref):
    k = pl.program_id(1)

    @pl.when(k == 0)
    def _():
        acc_ref[...] = jnp.zeros_like(acc_ref)

    acc_ref[...] += jnp.dot(l_ref[...], fk_ref[...],
                            preferred_element_type=jnp.float32)

    @pl.when(k == pl.num_programs(1) - 1)
    def _():
        lf = acc_ref[...]                                  # (tm, inFp) f32
        f = frow_ref[...].astype(jnp.float32)
        fs = fsrow_ref[...].astype(jnp.float32)
        h1 = (lf + fs).astype(packed_ref.dtype)            # (L + selfLoop) @ F
        inter = (lf * f).astype(packed_ref.dtype)           # (L @ F) * F
        packed_ref[...] = jnp.concatenate([h1, inter], axis=-1)


# ---------------------------------------------------------------------------
# Pass 2:  acc = L @ packed = [L@H1 | L@IF]   (K-tiled, f32 accumulate)
#          out = packed_row @ [[W1t];[0]] + acc @ [[0];[W2t]] + (b1 + b2)
#          (zero-padded weights -> no lane slicing / concat in the epilogue)
# ---------------------------------------------------------------------------
def _pass2_kernel(l_ref, pk_ref, prow_ref, w1_ref, w2_ref, b_ref, o_ref, acc_ref):
    k = pl.program_id(1)

    @pl.when(k == 0)
    def _():
        acc_ref[...] = jnp.zeros_like(acc_ref)

    acc_ref[...] += jnp.dot(l_ref[...], pk_ref[...],
                            preferred_element_type=jnp.float32)

    @pl.when(k == pl.num_programs(1) - 1)
    def _():
        part1 = jnp.dot(prow_ref[...].astype(jnp.float32), w1_ref[...],
                        preferred_element_type=jnp.float32)   # H1 @ W1t
        part2 = jnp.dot(acc_ref[...], w2_ref[...],
                        preferred_element_type=jnp.float32)   # (L@IF) @ W2t
        o_ref[...] = (part1 + part2 + b_ref[...]).astype(o_ref.dtype)


def _vmem_working_set(tm, tk, inFp, outFp):
    bf2, f4 = 2, 4
    return (2 * tm * tk * bf2                    # L panel (double-buffered, bf16)
            + 2 * tk * (2 * inFp) * bf2          # packed / F K-stream
            + 2 * tm * (2 * inFp) * bf2 * 2      # resident row tiles
            + 2 * 2 * (2 * inFp) * outFp * f4    # padded weights
            + 2 * outFp * f4                     # bias
            + 2 * tm * outFp * f4                # output tile
            + tm * (2 * inFp) * f4)              # f32 accumulator scratch


def gnn_layer_forward(laplacian, self_loop, features, w1t, b1, w2t, b2,
                      *, tm=512, tk=1024):
    N, inF = features.shape
    outF = w1t.shape[1]

    # selfLoop handling: NGCF builds an identity; we support any *diagonal*
    # selfLoop exactly via (L + S) @ F = L @ F + diag(S) * F.
    diag = jnp.diagonal(self_loop)
    sl_is_diag = True
    try:                                   # concrete arrays only (skip under jit)
        sl = np.asarray(self_loop)
        sl_is_diag = bool(np.allclose(sl, np.diag(np.diagonal(sl))))
    except Exception:
        pass
    if not sl_is_diag:
        raise NotImplementedError(
            "gnn_layer_forward expects a diagonal selfLoop (NGCF uses identity).")

    # ---- padding / tile selection ------------------------------------------
    inFp = _round_up(max(inF, 64), 64)          # 2*inFp is a multiple of 128
    outFp = _round_up(max(outF, 128), 128)      # lane-dense output stores

    # Per-generation VMEM budget (v5e/v6e: 128 MiB, v7x: 64 MiB per core).
    try:
        info = pltpu.get_tpu_info()
        vmem_cap = int(getattr(info, "vmem_capacity_bytes", 64 * _MiB))
    except Exception:
        vmem_cap = 64 * _MiB
    vmem_limit = int(min(max(vmem_cap - 16 * _MiB, 32 * _MiB), 100 * _MiB))

    Np0 = _round_up(N, 128)
    tm = max(128, (min(tm, Np0) // 128) * 128)
    tk = max(128, (min(tk, Np0) // 128) * 128)
    if Np0 // tm < 2 and Np0 >= 256:            # keep >=2 row tiles (v7x megacore)
        tm = max(128, ((Np0 // 2) // 128) * 128)
    while _vmem_working_set(tm, tk, inFp, outFp) > vmem_limit and tk > 128:
        tk = max(128, ((tk // 2) // 128) * 128)
    Np = _round_up(N, math.lcm(tm, tk))

    # ---- operand preparation (bf16 MXU streams, f32 params) ----------------
    lap_bf = jnp.pad(laplacian.astype(jnp.bfloat16),
                     ((0, Np - N), (0, Np - N)))
    feat_bf = jnp.pad(features.astype(jnp.bfloat16),
                      ((0, Np - N), (0, inFp - inF)))
    fs_bf = jnp.pad((diag[:, None] * features).astype(jnp.bfloat16),
                    ((0, Np - N), (0, inFp - inF)))

    w1p = jnp.pad(w1t.astype(jnp.float32), ((0, inFp - inF), (0, outFp - outF)))
    w2p = jnp.pad(w2t.astype(jnp.float32), ((0, inFp - inF), (0, outFp - outF)))
    w1big = jnp.concatenate([w1p, jnp.zeros_like(w1p)], axis=0)   # acts on H1 half
    w2big = jnp.concatenate([jnp.zeros_like(w2p), w2p], axis=0)   # acts on L@IF half
    bcat = jnp.pad((b1 + b2).astype(jnp.float32), ((0, 0), (0, outFp - outF)))

    grid = (Np // tm, Np // tk)
    cparams = pltpu.CompilerParams(
        dimension_semantics=("parallel", "arbitrary"),
        vmem_limit_bytes=vmem_limit,
    )

    # ---- Pass 1: packed = [ (L+S)@F | (L@F)*F ]  (bf16, lane-dense) --------
    packed = pl.pallas_call(
        _pass1_kernel,
        out_shape=jax.ShapeDtypeStruct((Np, 2 * inFp), jnp.bfloat16),
        grid=grid,
        in_specs=[
            pl.BlockSpec((tm, tk), lambda i, k: (i, k)),        # L rows (bf16)
            pl.BlockSpec((tk, inFp), lambda i, k: (k, 0)),      # F K-stream (bf16)
            pl.BlockSpec((tm, inFp), lambda i, k: (i, 0)),      # F row tile (bf16)
            pl.BlockSpec((tm, inFp), lambda i, k: (i, 0)),      # diag(S)*F row tile
        ],
        out_specs=pl.BlockSpec((tm, 2 * inFp), lambda i, k: (i, 0)),
        scratch_shapes=[pltpu.VMEM((tm, inFp), jnp.float32)],
        compiler_params=cparams,
    )(lap_bf, feat_bf, feat_bf, fs_bf)

    # ---- Pass 2: out = H1 @ W1t + (L @ IF) @ W2t + (b1 + b2) ---------------
    out_p = pl.pallas_call(
        _pass2_kernel,
        out_shape=jax.ShapeDtypeStruct((Np, outFp), jnp.float32),
        grid=grid,
        in_specs=[
            pl.BlockSpec((tm, tk), lambda i, k: (i, k)),            # L rows (bf16)
            pl.BlockSpec((tk, 2 * inFp), lambda i, k: (k, 0)),      # packed K-stream
            pl.BlockSpec((tm, 2 * inFp), lambda i, k: (i, 0)),      # packed row tile
            pl.BlockSpec((2 * inFp, outFp), lambda i, k: (0, 0)),   # [W1t; 0]
            pl.BlockSpec((2 * inFp, outFp), lambda i, k: (0, 0)),   # [0; W2t]
            pl.BlockSpec((1, outFp), lambda i, k: (0, 0)),          # b1 + b2
        ],
        out_specs=pl.BlockSpec((tm, outFp), lambda i, k: (i, 0)),
        scratch_shapes=[pltpu.VMEM((tm, 2 * inFp), jnp.float32)],
        compiler_params=cparams,
    )(lap_bf, packed, packed, w1big, w2big, bcat)

    return out_p[:N, :outF]


def _reference(laplacian, self_loop, features, w1t, b1, w2t, b2):
    L1 = laplacian + self_loop
    inter_feature = (laplacian @ features) * features
    p1 = (L1 @ features) @ w1t + b1
    p2 = (laplacian @ inter_feature) @ w2t + b2
    return p1 + p2


if __name__ == "__main__":
    key = jax.random.PRNGKey(0)
    N, inF, outF = 256, 64, 32

    k_lap, k_feat, k_w1, k_b1, k_w2, k_b2 = jax.random.split(key, 6)

    # Dense stand-ins for the sparse Laplacian + identity self-loop.
    laplacian = jax.random.normal(k_lap, (N, N), dtype=jnp.float32) * 0.05
    self_loop = jnp.eye(N, dtype=jnp.float32)
    features = jax.random.normal(k_feat, (N, inF), dtype=jnp.float32)

    # nn.Linear params. PyTorch weight is (outF, inF); pre-transpose so the
    # kernel does x @ W^T directly.
    bound = 1.0 / jnp.sqrt(jnp.float32(inF))
    w1 = jax.random.uniform(k_w1, (outF, inF), jnp.float32, -bound, bound)
    b1 = jax.random.uniform(k_b1, (1, outF), jnp.float32, -bound, bound)
    w2 = jax.random.uniform(k_w2, (outF, inF), jnp.float32, -bound, bound)
    b2 = jax.random.uniform(k_b2, (1, outF), jnp.float32, -bound, bound)
    w1t, w2t = w1.T, w2.T

    out = gnn_layer_forward(laplacian, self_loop, features, w1t, b1, w2t, b2)
    out = jax.block_until_ready(out)

    ref = _reference(laplacian, self_loop, features, w1t, b1, w2t, b2)
    assert out.shape == (N, outF)
    # bf16 MXU streams + bf16 packed intermediate (f32 accumulation) ->
    # loosened tolerance vs the f32 reference.
    assert jnp.allclose(out, ref, atol=5e-2, rtol=5e-2), "mismatch vs reference"

    print("KERNEL_OK")
</pallas_src>

<mosaic_0001>
module attributes {stable_mosaic.version = 11 : i64} {
  func.func @_pass1_kernel(%arg0: i32, %arg1: i32, %arg2: memref<128x256xbf16, #tpu.memory_space<vmem>>, %arg3: memref<256x64xbf16, #tpu.memory_space<vmem>>, %arg4: memref<128x64xbf16, #tpu.memory_space<vmem>>, %arg5: memref<128x64xbf16, #tpu.memory_space<vmem>>, %arg6: memref<128x128xbf16, #tpu.memory_space<vmem>>, %arg7: memref<128x64xf32, #tpu.memory_space<vmem>>) attributes {dimension_semantics = [#tpu.dimension_semantics<parallel>, #tpu.dimension_semantics<arbitrary>], iteration_bounds = array<i64: 2, 1>, scalar_prefetch = 0 : i64, scratch_operands = 1 : i64, tpu.core_type = #tpu.core_type<tc>, window_params = [{transform_indices = @transform_0, window_bounds = array<i64: 128, 256>}, {transform_indices = @transform_1, window_bounds = array<i64: 256, 64>}, {transform_indices = @transform_2, window_bounds = array<i64: 128, 64>}, {transform_indices = @transform_3, window_bounds = array<i64: 128, 64>}, {transform_indices = @transform_4, window_bounds = array<i64: 128, 128>}]} {
    %c0_i32 = arith.constant 0 : i32
    %0 = arith.cmpi eq, %arg1, %c0_i32 : i32
    %1 = arith.extui %0 : i1 to i32
    %c0_i32_0 = arith.constant 0 : i32
    %2 = arith.cmpi ne, %1, %c0_i32_0 : i32
    scf.if %2 {
      %cst_10 = arith.constant 0.000000e+00 : f32
      %12 = vector.broadcast %cst_10 : f32 to vector<128x64xf32>
      %c0_11 = arith.constant 0 : index
      %c0_12 = arith.constant 0 : index
      %13 = vector.load %arg7[%c0_11, %c0_12] : memref<128x64xf32, #tpu.memory_space<vmem>>, vector<128x64xf32>
      tpu.vector_store %arg7[%c0_11, %c0_12], %12 {strides = array<i32>} : memref<128x64xf32, #tpu.memory_space<vmem>>, vector<128x64xf32>,
    } else {
    }
    %c0 = arith.constant 0 : index
    %c0_1 = arith.constant 0 : index
    %3 = vector.load %arg7[%c0, %c0_1] : memref<128x64xf32, #tpu.memory_space<vmem>>, vector<128x64xf32>
    %c0_2 = arith.constant 0 : index
    %c0_3 = arith.constant 0 : index
    %4 = vector.load %arg2[%c0_2, %c0_3] : memref<128x256xbf16, #tpu.memory_space<vmem>>, vector<128x256xbf16>
    %c0_4 = arith.constant 0 : index
    %c0_5 = arith.constant 0 : index
    %5 = vector.load %arg3[%c0_4, %c0_5] : memref<256x64xbf16, #tpu.memory_space<vmem>>, vector<256x64xbf16>
    %cst = arith.constant dense<0.000000e+00> : vector<128x64xf32>
    %6 = tpu.matmul %4, %5, %cst {dimension_numbers = #tpu.dot_dimension_numbers<[1], [0], [0], [1], [0, 0, 1, 1], [], []>} : vector<128x256xbf16>, vector<256x64xbf16>, vector<128x64xf32> -> vector<128x64xf32>
    %7 = arith.addf %3, %6 : vector<128x64xf32>
    %c0_6 = arith.constant 0 : index
    %c0_7 = arith.constant 0 : index
    %8 = vector.load %arg7[%c0_6, %c0_7] : memref<128x64xf32, #tpu.memory_space<vmem>>, vector<128x64xf32>
    tpu.vector_store %arg7[%c0_6, %c0_7], %7 {strides = array<i32>} : memref<128x64xf32, #tpu.memory_space<vmem>>, vector<128x64xf32>,
    %c0_i32_8 = arith.constant 0 : i32
    %9 = arith.cmpi eq, %arg1, %c0_i32_8 : i32
    %10 = arith.extui %9 : i1 to i32
    %c0_i32_9 = arith.constant 0 : i32
    %11 = arith.cmpi ne, %10, %c0_i32_9 : i32
    scf.if %11 {
      %c0_10 = arith.constant 0 : index
      %c0_11 = arith.constant 0 : index
      %12 = vector.load %arg7[%c0_10, %c0_11] : memref<128x64xf32, #tpu.memory_space<vmem>>, vector<128x64xf32>
      %c0_12 = arith.constant 0 : index
      %c0_13 = arith.constant 0 : index
      %13 = vector.load %arg4[%c0_12, %c0_13] : memref<128x64xbf16, #tpu.memory_space<vmem>>, vector<128x64xbf16>
      %14 = arith.extf %13 : vector<128x64xbf16> to vector<128x64xf32>
      %c0_14 = arith.constant 0 : index
      %c0_15 = arith.constant 0 : index
      %15 = vector.load %arg5[%c0_14, %c0_15] : memref<128x64xbf16, #tpu.memory_space<vmem>>, vector<128x64xbf16>
      %16 = arith.extf %15 : vector<128x64xbf16> to vector<128x64xf32>
      %17 = arith.addf %12, %16 : vector<128x64xf32>
      %18 = arith.truncf %17 : vector<128x64xf32> to vector<128x64xbf16>
      %19 = arith.mulf %12, %14 : vector<128x64xf32>
      %20 = arith.truncf %19 : vector<128x64xf32> to vector<128x64xbf16>
      %21 = tpu.concatenate %18, %20 in 1 : vector<128x64xbf16>, vector<128x64xbf16> -> vector<128x128xbf16>
      %c0_16 = arith.constant 0 : index
      %c0_17 = arith.constant 0 : index
      %22 = vector.load %arg6[%c0_16, %c0_17] : memref<128x128xbf16, #tpu.memory_space<vmem>>, vector<128x128xbf16>
      tpu.vector_store %arg6[%c0_16, %c0_17], %21 {strides = array<i32>} : memref<128x128xbf16, #tpu.memory_space<vmem>>, vector<128x128xbf16>,
    } else {
    }
    return
  }
  func.func @transform_0(%arg0: i32, %arg1: i32) -> (i32, i32) {
    %c0_i32 = arith.constant 0 : i32
    return %arg0, %arg1 : i32, i32
  }
  func.func @transform_1(%arg0: i32, %arg1: i32) -> (i32, i32) {
    %c0_i32 = arith.constant 0 : i32
    %c0_i32_0 = arith.constant 0 : i32
    return %arg1, %c0_i32 : i32, i32
  }
  func.func @transform_2(%arg0: i32, %arg1: i32) -> (i32, i32) {
    %c0_i32 = arith.constant 0 : i32
    %c0_i32_0 = arith.constant 0 : i32
    return %arg0, %c0_i32 : i32, i32
  }
  func.func @transform_3(%arg0: i32, %arg1: i32) -> (i32, i32) {
    %c0_i32 = arith.constant 0 : i32
    %c0_i32_0 = arith.constant 0 : i32
    return %arg0, %c0_i32 : i32, i32
  }
  func.func @transform_4(%arg0: i32, %arg1: i32) -> (i32, i32) {
    %c0_i32 = arith.constant 0 : i32
    %c0_i32_0 = arith.constant 0 : i32
    return %arg0, %c0_i32 : i32, i32
  }
}

</mosaic_0001>

<llo_original>
// kernel: tpu_custom_call.1
$region0: #{tpu_custom_call.1}
  #allocation0 [shape = 'u32[]', space=smem, size = 0x4, offset = 0x4, fixed_abs, tag = 'smem constant byte address 0x4 - core index']
  #allocation1 [shape = 'u32[144,128]{1,0:T(1,128)}', space=vmem, size = 0x12000, scoped, tag = 'internal scratch']
  #allocation2 [shape = 'f32[128,64]{1,0:T(8,128)}', space=vmem, size = 0x10000, scoped, tag = 'scratch operand']
  %s0 = inlined_call_operand.vmem [shape: bf16[256,256], index: 0, kind: input, shape index: {}]
  %s1 = inlined_call_operand.vmem [shape: bf16[256,64], index: 1, kind: input, shape index: {}]
  %s2 = inlined_call_operand.vmem [shape: bf16[256,64], index: 2, kind: input, shape index: {}]
  %s3 = inlined_call_operand.vmem [shape: bf16[256,64], index: 3, kind: input, shape index: {}]
  %s4 = inlined_call_operand.hbm [shape: bf16[256,128], index: 4, kind: output, shape index: {}]
  %s5 = sld [smem:[#allocation0]]
  $region57: #{tpu_custom_call.1} parent=0
    _
  %s7 = ssub.s32 1, %s5
  %s8 = scalar_select 0, %s7, %s5
  $region1: #{tpu_custom_call.1} parent=0
    #allocation3 [shape = 'u8[65536]{0}', space=vmem, size = 0x10000, scoped, tag = 'output window, operand 0']
    #allocation4 [shape = 's32[2]{0}', space=sflag, size = 0x8, scoped, tag = 'scoped memory for tpu_custom_call.1']
    %9 = vsyncpa [#allocation4], 0
    %s10 = scalar_lea.sflag [#allocation4], 1
    %11 = vsyncpa %s10, 0
    loop: start=0, step=1, limit=4
    $region2: #{tpu_custom_call.1} parent=1 // loop_pre_header
      _
    $region3: #{tpu_custom_call.1} parent=1 // loop_header
      %s13 = sphi 0, %s17
      %p14 = scmp.ge.s32.totalorder %s13, 4
      %s20 = sphi 0, %s32
      %s21 = sphi 0, %s28
      %s22 = sphi 0, %s20
      %s23 = sphi 0, %s21
      %s24 = sphi 0, %s22
      %s25 = sphi 0, %s23
      %s37 = sphi 0, %s39
      %s40 = sphi 0, %s37
      %s41 = sphi 0, %s40
      %s57 = sphi 0, %s41
      %s63 = sphi 0, %s65
      %s66 = sphi 0, %s63
      %s67 = sphi 0, %s66
      %s83 = sphi 0, %s67
      %s89 = sphi 0, %s91
      %s92 = sphi 0, %s89
      %s93 = sphi 0, %s92
      %s109 = sphi 0, %s93
      %s115 = sphi 0, %s117
      %s118 = sphi 0, %s115
      %s119 = sphi 0, %s118
      %s135 = sphi 0, %s119
      %s141 = sphi 0, %s143
      %s144 = sphi 0, %s141
      %s145 = sphi 0, %s144
      %s161 = sphi 0, %s145
    $region4: #{tpu_custom_call.1} parent=1 // loop_header_branch
      %16 = sbr.rel (%p14) target = $region8
    $region5: #{tpu_custom_call.1} parent=1 // loop_body
      %s18 = ssub.s32 %s13, 1
      %s19 = ssub.s32 %s13, 2
      %s26 = sadd.s32 1, %s21
      %p27 = scmp.ge.s32.totalorder %s26, 1
      %s28 = scalar_select %p27, 0, %s26
      %s29 = sadd.s32 1, %s20
      %s30 = scalar_select %p27, %s29, %s20
      %p31 = scmp.ge.s32.totalorder %s30, 2
      %s32 = scalar_select %p31, 0, %s30
      %s33 = ssub.s32 %s20, %s32
      %s34 = ssub.s32 %s21, %s28
      %s35 = sor.u32 %s33, %s34
      %p36 = scmp.eq.s32.totalorder %s35, 0
      %s38 = sadd.s32 %s37, 1
      %s39 = scalar_select %p36, %s37, %s38
      %p42 = pneg %p36
      %p43 = scmp.eq.s32.totalorder %s13, 1
      %p44 = por %p42, %p43
      %p45 = scmp.ne.s32.totalorder %s37, %s40
      %p46 = scmp.eq.s32.totalorder %s13, 0
      %p47 = por %p45, %p46
      %p48 = scmp.ne.s32.totalorder %s37, %s40
      %p49 = scmp.eq.s32.totalorder %s18, 1
      %p50 = por %p48, %p49
      %p51 = scmp.ne.s32.totalorder %s40, %s41
      %p52 = scmp.eq.s32.totalorder %s18, 0
      %p53 = por %p51, %p52
      %p54 = scmp.ne.s32.totalorder %s40, %s41
      %p55 = scmp.eq.s32.totalorder %s19, 1
      %p56 = por %p54, %p55
      %p58 = scmp.ne.s32.totalorder %s41, %s57
      %p59 = scmp.eq.s32.totalorder %s19, 0
      %p60 = por %p58, %p59
      %s61 = ssub.s32 %s21, %s28
      %p62 = scmp.eq.s32.totalorder %s61, 0
      %s64 = sadd.s32 %s63, 1
      %s65 = scalar_select %p62, %s63, %s64
      %p68 = pneg %p62
      %p69 = scmp.eq.s32.totalorder %s13, 1
      %p70 = por %p68, %p69
      %p71 = scmp.ne.s32.totalorder %s63, %s66
      %p72 = scmp.eq.s32.totalorder %s13, 0
      %p73 = por %p71, %p72
      %p74 = scmp.ne.s32.totalorder %s63, %s66
      %p75 = scmp.eq.s32.totalorder %s18, 1
      %p76 = por %p74, %p75
      %p77 = scmp.ne.s32.totalorder %s66, %s67
      %p78 = scmp.eq.s32.totalorder %s18, 0
      %p79 = por %p77, %p78
      %p80 = scmp.ne.s32.totalorder %s66, %s67
      %p81 = scmp.eq.s32.totalorder %s19, 1
      %p82 = por %p80, %p81
      %p84 = scmp.ne.s32.totalorder %s67, %s83
      %p85 = scmp.eq.s32.totalorder %s19, 0
      %p86 = por %p84, %p85
      %s87 = ssub.s32 %s20, %s32
      %p88 = scmp.eq.s32.totalorder %s87, 0
      %s90 = sadd.s32 %s89, 1
      %s91 = scalar_select %p88, %s89, %s90
      %p94 = pneg %p88
      %p95 = scmp.eq.s32.totalorder %s13, 1
      %p96 = por %p94, %p95
      %p97 = scmp.ne.s32.totalorder %s89, %s92
      %p98 = scmp.eq.s32.totalorder %s13, 0
      %p99 = por %p97, %p98
      %p100 = scmp.ne.s32.totalorder %s89, %s92
      %p101 = scmp.eq.s32.totalorder %s18, 1
      %p102 = por %p100, %p101
      %p103 = scmp.ne.s32.totalorder %s92, %s93
      %p104 = scmp.eq.s32.totalorder %s18, 0
      %p105 = por %p103, %p104
      %p106 = scmp.ne.s32.totalorder %s92, %s93
      %p107 = scmp.eq.s32.totalorder %s19, 1
      %p108 = por %p106, %p107
      %p110 = scmp.ne.s32.totalorder %s93, %s109
      %p111 = scmp.eq.s32.totalorder %s19, 0
      %p112 = por %p110, %p111
      %s113 = ssub.s32 %s20, %s32
      %p114 = scmp.eq.s32.totalorder %s113, 0
      %s116 = sadd.s32 %s115, 1
      %s117 = scalar_select %p114, %s115, %s116
      %p120 = pneg %p114
      %p121 = scmp.eq.s32.totalorder %s13, 1
      %p122 = por %p120, %p121
      %p123 = scmp.ne.s32.totalorder %s115, %s118
      %p124 = scmp.eq.s32.totalorder %s13, 0
      %p125 = por %p123, %p124
      %p126 = scmp.ne.s32.totalorder %s115, %s118
      %p127 = scmp.eq.s32.totalorder %s18, 1
      %p128 = por %p126, %p127
      %p129 = scmp.ne.s32.totalorder %s118, %s119
      %p130 = scmp.eq.s32.totalorder %s18, 0
      %p131 = por %p129, %p130
      %p132 = scmp.ne.s32.totalorder %s118, %s119
      %p133 = scmp.eq.s32.totalorder %s19, 1
      %p134 = por %p132, %p133
      %p136 = scmp.ne.s32.totalorder %s119, %s135
      %p137 = scmp.eq.s32.totalorder %s19, 0
      %p138 = por %p136, %p137
      %s139 = ssub.s32 %s20, %s32
      %p140 = scmp.eq.s32.totalorder %s139, 0
      %s142 = sadd.s32 %s141, 1
      %s143 = scalar_select %p140, %s141, %s142
      %p146 = pneg %p140
      %p147 = scmp.eq.s32.totalorder %s13, 1
      %p148 = por %p146, %p147
      %p149 = scmp.ne.s32.totalorder %s141, %s144
      %p150 = scmp.eq.s32.totalorder %s13, 0
      %p151 = por %p149, %p150
      %p152 = scmp.ne.s32.totalorder %s141, %s144
      %p153 = scmp.eq.s32.totalorder %s18, 1
      %p154 = por %p152, %p153
      %p155 = scmp.ne.s32.totalorder %s144, %s145
      %p156 = scmp.eq.s32.totalorder %s18, 0
      %p157 = por %p155, %p156
      %p158 = scmp.ne.s32.totalorder %s144, %s145
      %p159 = scmp.eq.s32.totalorder %s19, 1
      %p160 = por %p158, %p159
      %p162 = scmp.ne.s32.totalorder %s145, %s161
      %p163 = scmp.eq.s32.totalorder %s19, 0
      %p164 = por %p162, %p163
      %p165 = scmp.le.s32.totalorder 1, %s13
      %p166 = scmp.lt.s32.totalorder %s13, 3
      %p167 = pnand %p165, %p166
      %p168 = pneg %p167
      // Predicated region
      $region9: #{tpu_custom_call.1} parent=5 // pred_check
        _
      $region10: #{tpu_custom_call.1} parent=5 // pred_check_branch
        %170 = sbr.rel (%p167) target = $region12
      $region11: #{tpu_custom_call.1} parent=5 // pred_region
        %s171 = ssub.s32 %s13, 1
        // Predicated region
        $region13: #{tpu_custom_call.1} parent=11 // pred_check
          %p172 = pneg %p79
        $region14: #{tpu_custom_call.1} parent=11 // pred_check_branch
          %174 = sbr.rel (%p172) target = $region16
        $region15: #{tpu_custom_call.1} parent=11 // pred_region
          %s175 = smul.u32 32, %s23
          %p176 = scmp.lt.s32.totalorder %s175, 31
          %s177 = scalar_select %p176, %s175, 31
          %s178 = smul.addr %s177, 4
          %s179 = scalar_lea.vmem %s1, %s178
          %s180 = smul.u32 32, %s23
        $region16: #{tpu_custom_call.1} parent=11 // pred_fallthru
          _
      $region12: #{tpu_custom_call.1} parent=5 // pred_fallthru
        _
      %p181 = scmp.lt.s32.totalorder %s13, 2
      // Predicated region
      $region17: #{tpu_custom_call.1} parent=5 // pred_check
        %p182 = pneg %p181
      $region18: #{tpu_custom_call.1} parent=5 // pred_check_branch
        %184 = sbr.rel (%p182) target = $region20
      $region19: #{tpu_custom_call.1} parent=5 // pred_region
        // Predicated region
        $region21: #{tpu_custom_call.1} parent=19 // pred_check
          %p185 = pneg %p47
        $region22: #{tpu_custom_call.1} parent=19 // pred_check_branch
          %187 = sbr.rel (%p185) target = $region24
        $region23: #{tpu_custom_call.1} parent=19 // pred_region
          %s188 = smul.u32 16, %s20
          %s189 = smul.u32 2, %s21
          %p190 = scmp.lt.s32.totalorder %s188, 31
          %s191 = scalar_select %p190, %s188, 31
          %p192 = scmp.lt.s32.totalorder %s189, 1
          %s193 = scalar_select %p192, %s189, 1
          %s194 = smul.addr %s191, 2
          %s195 = sadd.s32 %s193, %s194
          %s196 = smul.addr %s195, 4
          %s197 = scalar_lea.vmem %s0, %s196
          %s198 = smul.u32 16, %s20
          %s199 = smul.u32 2, %s21
        $region24: #{tpu_custom_call.1} parent=19 // pred_fallthru
          _
        // Predicated region
        $region25: #{tpu_custom_call.1} parent=19 // pred_check
          %p200 = pneg %p99
        $region26: #{tpu_custom_call.1} parent=19 // pred_check_branch
          %202 = sbr.rel (%p200) target = $region28
        $region27: #{tpu_custom_call.1} parent=19 // pred_region
          %s203 = smul.u32 16, %s20
          %p204 = scmp.lt.s32.totalorder %s203, 31
          %s205 = scalar_select %p204, %s203, 31
          %s206 = smul.addr %s205, 4
          %s207 = scalar_lea.vmem %s2, %s206
          %s208 = smul.u32 16, %s20
        $region28: #{tpu_custom_call.1} parent=19 // pred_fallthru
          _
        // Predicated region
        $region29: #{tpu_custom_call.1} parent=19 // pred_check
          %p209 = pneg %p125
        $region30: #{tpu_custom_call.1} parent=19 // pred_check_branch
          %211 = sbr.rel (%p209) target = $region32
        $region31: #{tpu_custom_call.1} parent=19 // pred_region
          %s212 = smul.u32 16, %s20
          %p213 = scmp.lt.s32.totalorder %s212, 31
          %s214 = scalar_select %p213, %s212, 31
          %s215 = smul.addr %s214, 4
          %s216 = scalar_lea.vmem %s3, %s215
          %s217 = smul.u32 16, %s20
        $region32: #{tpu_custom_call.1} parent=19 // pred_fallthru
          _
      $region20: #{tpu_custom_call.1} parent=5 // pred_fallthru
        _
      %p218 = scmp.le.s32.totalorder 1, %s13
      %p219 = scmp.lt.s32.totalorder %s13, 3
      %p220 = pnand %p218, %p219
      %p221 = pneg %p220
      // Predicated region
      $region33: #{tpu_custom_call.1} parent=5 // pred_check
        _
      $region34: #{tpu_custom_call.1} parent=5 // pred_check_branch
        %223 = sbr.rel (%p220) target = $region36
      $region35: #{tpu_custom_call.1} parent=5 // pred_region
        %s224 = ssub.s32 %s13, 1
        %s225 = smul.u32 16, %s22
        %s226 = smul.u32 2, %s23
        %p227 = scmp.lt.s32.totalorder %s225, 31
        %s228 = scalar_select %p227, %s225, 31
        %p229 = scmp.lt.s32.totalorder %s226, 1
        %s230 = scalar_select %p229, %s226, 1
        %s231 = smul.addr %s228, 2
        %s232 = sadd.s32 %s230, %s231
        %s233 = smul.addr %s232, 4
        %s234 = scalar_lea.vmem %s0, %s233
        %p235 = pneg %p53
        %p236 = pneg %p50
        %s237 = smul.u32 32, %s23
        %p238 = scmp.lt.s32.totalorder %s237, 31
        %s239 = scalar_select %p238, %s237, 31
        %s240 = smul.addr %s239, 4
        %s241 = scalar_lea.vmem %s1, %s240
        %p242 = pneg %p79
        %p243 = pneg %p76
        %s244 = smul.u32 16, %s22
        %p245 = scmp.lt.s32.totalorder %s244, 31
        %s246 = scalar_select %p245, %s244, 31
        %s247 = smul.addr %s246, 4
        %s248 = scalar_lea.vmem %s2, %s247
        %p249 = pneg %p105
        %p250 = pneg %p102
        %s251 = smul.u32 16, %s22
        %p252 = scmp.lt.s32.totalorder %s251, 31
        %s253 = scalar_select %p252, %s251, 31
        %s254 = smul.addr %s253, 4
        %s255 = scalar_lea.vmem %s3, %s254
        %p256 = pneg %p131
        %p257 = pneg %p128
        %p258 = pneg %p157
        %p259 = pneg %p154
        %s260 = sand.u32 %s144, 1
        %s261 = scalar_lea.sflag [#allocation4], %s260
        %s262 = sand.u32 %s144, 1
        %s263 = smul.addr %s262, 64
        %s264 = scalar_lea.vmem [#allocation3], %s263
        %s265 = smul.u32 16, %s22
        %s266 = smul.u32 2, %s23
        %p267 = scmp.lt.s32.totalorder %s265, 31
        %s268 = scalar_select %p267, %s265, 31
        %p269 = scmp.lt.s32.totalorder %s266, 1
        %s270 = scalar_select %p269, %s266, 1
        %s271 = smul.addr %s268, 2
        %s272 = sadd.s32 %s270, %s271
        %s273 = smul.addr %s272, 4
        %s274 = scalar_lea.vmem %s0, %s273
        %s275 = smul.u32 16, %s22
        %s276 = smul.u32 2, %s23
        %s277 = smul.u32 32, %s23
        %p278 = scmp.lt.s32.totalorder %s277, 31
        %s279 = scalar_select %p278, %s277, 31
        %s280 = smul.addr %s279, 4
        %s281 = scalar_lea.vmem %s1, %s280
        %s282 = smul.u32 32, %s23
        %s283 = smul.u32 16, %s22
        %p284 = scmp.lt.s32.totalorder %s283, 31
        %s285 = scalar_select %p284, %s283, 31
        %s286 = smul.addr %s285, 4
        %s287 = scalar_lea.vmem %s2, %s286
        %s288 = smul.u32 16, %s22
        %s289 = smul.u32 16, %s22
        %p290 = scmp.lt.s32.totalorder %s289, 31
        %s291 = scalar_select %p290, %s289, 31
        %s292 = smul.addr %s291, 4
        %s293 = scalar_lea.vmem %s3, %s292
        %s294 = smul.u32 16, %s22
        %s295 = smul.u32 16, %s22
        %p297 = scmp.eq.s32.totalorder %s23, 0
        // Predicated region
        $region37: #{tpu_custom_call.1} parent=35 // pred_check
          %p298 = pneg %p297
        $region38: #{tpu_custom_call.1} parent=35 // pred_check_branch
          %300 = sbr.rel (%p298) target = $region40
        $region39: #{tpu_custom_call.1} parent=35 // pred_region
          %vm301 = vcmask 523264
          %302 = vst.msk [vmem:[#allocation2] sm:$0xff] %vm301, 0.0
          %303 = vst.msk [vmem:[#allocation2 + $0x8] sm:$0xff] %vm301, 0.0
          %304 = vst.msk [vmem:[#allocation2 + $0x10] sm:$0xff] %vm301, 0.0
          %305 = vst.msk [vmem:[#allocation2 + $0x18] sm:$0xff] %vm301, 0.0
          %306 = vst.msk [vmem:[#allocation2 + $0x20] sm:$0xff] %vm301, 0.0
          %307 = vst.msk [vmem:[#allocation2 + $0x28] sm:$0xff] %vm301, 0.0
          %308 = vst.msk [vmem:[#allocation2 + $0x30] sm:$0xff] %vm301, 0.0
          %309 = vst.msk [vmem:[#allocation2 + $0x38] sm:$0xff] %vm301, 0.0
          %310 = vst.msk [vmem:[#allocation2 + $0x40] sm:$0xff] %vm301, 0.0
          %311 = vst.msk [vmem:[#allocation2 + $0x48] sm:$0xff] %vm301, 0.0
          %312 = vst.msk [vmem:[#allocation2 + $0x50] sm:$0xff] %vm301, 0.0
          %313 = vst.msk [vmem:[#allocation2 + $0x58] sm:$0xff] %vm301, 0.0
          %314 = vst.msk [vmem:[#allocation2 + $0x60] sm:$0xff] %vm301, 0.0
          %315 = vst.msk [vmem:[#allocation2 + $0x68] sm:$0xff] %vm301, 0.0
          %316 = vst.msk [vmem:[#allocation2 + $0x70] sm:$0xff] %vm301, 0.0
          %317 = vst.msk [vmem:[#allocation2 + $0x78] sm:$0xff] %vm301, 0.0
        $region40: #{tpu_custom_call.1} parent=35 // pred_fallthru
          _
        %v318 = vld [vmem:[#allocation2] sm:$0xff]
        %v319 = vld [vmem:[#allocation2 + $0x8] sm:$0xff]
        %v320 = vld [vmem:[#allocation2 + $0x10] sm:$0xff]
        %v321 = vld [vmem:[#allocation2 + $0x18] sm:$0xff]
        %v322 = vld [vmem:[#allocation2 + $0x20] sm:$0xff]
        %v323 = vld [vmem:[#allocation2 + $0x28] sm:$0xff]
        %v324 = vld [vmem:[#allocation2 + $0x30] sm:$0xff]
        %v325 = vld [vmem:[#allocation2 + $0x38] sm:$0xff]
        %v326 = vld [vmem:[#allocation2 + $0x40] sm:$0xff]
        %v327 = vld [vmem:[#allocation2 + $0x48] sm:$0xff]
        %v328 = vld [vmem:[#allocation2 + $0x50] sm:$0xff]
        %v329 = vld [vmem:[#allocation2 + $0x58] sm:$0xff]
        %v330 = vld [vmem:[#allocation2 + $0x60] sm:$0xff]
        %v331 = vld [vmem:[#allocation2 + $0x68] sm:$0xff]
        %v332 = vld [vmem:[#allocation2 + $0x70] sm:$0xff]
        %v333 = vld [vmem:[#allocation2 + $0x78] sm:$0xff]
        %v334 = vld [vmem:[%s274] sm:$0xff]
        %v335 = vld [vmem:[%s274 + $0x8] sm:$0xff]
        %v336 = vld [vmem:[%s274 + $0x10] sm:$0xff]
        %v337 = vld [vmem:[%s274 + $0x18] sm:$0xff]
        %v338 = vld [vmem:[%s274 + $0x20] sm:$0xff]
        %v339 = vld [vmem:[%s274 + $0x28] sm:$0xff]
        %v340 = vld [vmem:[%s274 + $0x30] sm:$0xff]
        %v341 = vld [vmem:[%s274 + $0x38] sm:$0xff]
        %v342 = vld [vmem:[%s274 + $0x40] sm:$0xff]
        %v343 = vld [vmem:[%s274 + $0x48] sm:$0xff]
        %v344 = vld [vmem:[%s274 + $0x50] sm:$0xff]
        %v345 = vld [vmem:[%s274 + $0x58] sm:$0xff]
        %v346 = vld [vmem:[%s274 + $0x60] sm:$0xff]
        %v347 = vld [vmem:[%s274 + $0x68] sm:$0xff]
        %v348 = vld [vmem:[%s274 + $0x70] sm:$0xff]
        %v349 = vld [vmem:[%s274 + $0x78] sm:$0xff]
        %v350 = vld [vmem:[%s281] sm:$0xf]
        %v351 = vld [vmem:[%s281 + $0x4] sm:$0xf]
        %v352 = vld [vmem:[%s281 + $0x8] sm:$0xf]
        %v353 = vld [vmem:[%s281 + $0xc] sm:$0xf]
        %v354 = vld [vmem:[%s281 + $0x10] sm:$0xf]
        %v355 = vld [vmem:[%s281 + $0x14] sm:$0xf]
        %v356 = vld [vmem:[%s281 + $0x18] sm:$0xf]
        %v357 = vld [vmem:[%s281 + $0x1c] sm:$0xf]
        %v358 = vld [vmem:[%s281 + $0x20] sm:$0xf]
        %v359 = vld [vmem:[%s281 + $0x24] sm:$0xf]
        %v360 = vld [vmem:[%s281 + $0x28] sm:$0xf]
        %v361 = vld [vmem:[%s281 + $0x2c] sm:$0xf]
        %v362 = vld [vmem:[%s281 + $0x30] sm:$0xf]
        %v363 = vld [vmem:[%s281 + $0x34] sm:$0xf]
        %v364 = vld [vmem:[%s281 + $0x38] sm:$0xf]
        %v365 = vld [vmem:[%s281 + $0x3c] sm:$0xf]
        %v366 = vld [vmem:[%s281 + $0x40] sm:$0xf]
        %v367 = vld [vmem:[%s281 + $0x44] sm:$0xf]
        %v368 = vld [vmem:[%s281 + $0x48] sm:$0xf]
        %v369 = vld [vmem:[%s281 + $0x4c] sm:$0xf]
        %v370 = vld [vmem:[%s281 + $0x50] sm:$0xf]
        %v371 = vld [vmem:[%s281 + $0x54] sm:$0xf]
        %v372 = vld [vmem:[%s281 + $0x58] sm:$0xf]
        %v373 = vld [vmem:[%s281 + $0x5c] sm:$0xf]
        %v374 = vld [vmem:[%s281 + $0x60] sm:$0xf]
        %v375 = vld [vmem:[%s281 + $0x64] sm:$0xf]
        %v376 = vld [vmem:[%s281 + $0x68] sm:$0xf]
        %v377 = vld [vmem:[%s281 + $0x6c] sm:$0xf]
        %v378 = vld [vmem:[%s281 + $0x70] sm:$0xf]
        %v379 = vld [vmem:[%s281 + $0x74] sm:$0xf]
        %v380 = vld [vmem:[%s281 + $0x78] sm:$0xf]
        %v381 = vld [vmem:[%s281 + $0x7c] sm:$0xf]
        %v398 = vunpack.c.l.b16 %v334
        %v399 = vunpack.c.h.b16 %v334
        %v400 = vunpack.c.l.b16 %v335
        %v401 = vunpack.c.h.b16 %v335
        %v402 = vunpack.c.l.b16 %v336
        %v403 = vunpack.c.h.b16 %v336
        %v404 = vunpack.c.l.b16 %v337
        %v405 = vunpack.c.h.b16 %v337
        %v406 = vunpack.c.l.b16 %v338
        %v407 = vunpack.c.h.b16 %v338
        %v408 = vunpack.c.l.b16 %v339
        %v409 = vunpack.c.h.b16 %v339
        %v410 = vunpack.c.l.b16 %v340
        %v411 = vunpack.c.h.b16 %v340
        %v412 = vunpack.c.l.b16 %v341
        %v413 = vunpack.c.h.b16 %v341
        %v414 = vunpack.c.l.b16 %v342
        %v415 = vunpack.c.h.b16 %v342
        %v416 = vunpack.c.l.b16 %v343
        %v417 = vunpack.c.h.b16 %v343
        %v418 = vunpack.c.l.b16 %v344
        %v419 = vunpack.c.h.b16 %v344
        %v420 = vunpack.c.l.b16 %v345
        %v421 = vunpack.c.h.b16 %v345
        %v422 = vunpack.c.l.b16 %v346
        %v423 = vunpack.c.h.b16 %v346
        %v424 = vunpack.c.l.b16 %v347
        %v425 = vunpack.c.h.b16 %v347
        %v426 = vunpack.c.l.b16 %v348
        %v427 = vunpack.c.h.b16 %v348
        %v428 = vunpack.c.l.b16 %v349
        %v429 = vunpack.c.h.b16 %v349
        %v430 = vpack.c.b16 %v400, %v398
        %v431 = vpack.c.b16 %v401, %v399
        %v432 = vpack.c.b16 %v404, %v402
        %v433 = vpack.c.b16 %v405, %v403
        %v434 = vpack.c.b16 %v408, %v406
        %v435 = vpack.c.b16 %v409, %v407
        %v436 = vpack.c.b16 %v412, %v410
        %v437 = vpack.c.b16 %v413, %v411
        %v438 = vpack.c.b16 %v416, %v414
        %v439 = vpack.c.b16 %v417, %v415
        %v440 = vpack.c.b16 %v420, %v418
        %v441 = vpack.c.b16 %v421, %v419
        %v442 = vpack.c.b16 %v424, %v422
        %v443 = vpack.c.b16 %v425, %v423
        %v444 = vpack.c.b16 %v428, %v426
        %v445 = vpack.c.b16 %v429, %v427
        %v494 = vunpack.c.l.b16 %v350
        %v495 = vunpack.c.l.b16 %v351
        %v496 = vunpack.c.l.b16 %v352
        %v497 = vunpack.c.l.b16 %v353
        %v498 = vunpack.c.l.b16 %v354
        %v499 = vunpack.c.l.b16 %v355
        %v500 = vunpack.c.l.b16 %v356
        %v501 = vunpack.c.l.b16 %v357
        %v502 = vunpack.c.l.b16 %v358
        %v503 = vunpack.c.l.b16 %v359
        %v504 = vunpack.c.l.b16 %v360
        %v505 = vunpack.c.l.b16 %v361
        %v506 = vunpack.c.l.b16 %v362
        %v507 = vunpack.c.l.b16 %v363
        %v508 = vunpack.c.l.b16 %v364
        %v509 = vunpack.c.l.b16 %v365
        %v510 = vunpack.c.l.b16 %v366
        %v511 = vunpack.c.l.b16 %v367
        %v512 = vunpack.c.l.b16 %v368
        %v513 = vunpack.c.l.b16 %v369
        %v514 = vunpack.c.l.b16 %v370
        %v515 = vunpack.c.l.b16 %v371
        %v516 = vunpack.c.l.b16 %v372
        %v517 = vunpack.c.l.b16 %v373
        %v518 = vunpack.c.l.b16 %v374
        %v519 = vunpack.c.l.b16 %v375
        %v520 = vunpack.c.l.b16 %v376
        %v521 = vunpack.c.l.b16 %v377
        %v522 = vunpack.c.l.b16 %v378
        %v523 = vunpack.c.l.b16 %v379
        %v524 = vunpack.c.l.b16 %v380
        %v525 = vunpack.c.l.b16 %v381
        %v526 = vpack.c.b16 %v495, %v494
        %v527 = vpack.c.b16 %v497, %v496
        %v528 = vpack.c.b16 %v499, %v498
        %v529 = vpack.c.b16 %v501, %v500
        %v530 = vpack.c.b16 %v503, %v502
        %v531 = vpack.c.b16 %v505, %v504
        %v532 = vpack.c.b16 %v507, %v506
        %v533 = vpack.c.b16 %v509, %v508
        %v534 = vpack.c.b16 %v511, %v510
        %v535 = vpack.c.b16 %v513, %v512
        %v536 = vpack.c.b16 %v515, %v514
        %v537 = vpack.c.b16 %v517, %v516
        %v538 = vpack.c.b16 %v519, %v518
        %v539 = vpack.c.b16 %v521, %v520
        %v540 = vpack.c.b16 %v523, %v522
        %v541 = vpack.c.b16 %v525, %v524
        %558 = vmatprep.subr.bf16.mxu0 0
        %559 = vmatpush1.bf16.msra.mxu0 %v526
        %560 = vmatprep.subr.bf16.mxu0 0
        %561 = vmatpush1.bf16.msra.mxu0 %v527
        %562 = vmatprep.subr.bf16.mxu0 0
        %563 = vmatpush1.bf16.msra.mxu0 %v528
        %564 = vmatprep.subr.bf16.mxu0 0
        %565 = vmatpush1.bf16.msra.mxu0 %v529
        %566 = vmatprep.subr.bf16.mxu0 0
        %567 = vmatpush1.bf16.msra.mxu0 %v530
        %568 = vmatprep.subr.bf16.mxu0 0
        %569 = vmatpush1.bf16.msra.mxu0 %v531
        %570 = vmatprep.subr.bf16.mxu0 0
        %571 = vmatpush1.bf16.msra.mxu0 %v532
        %572 = vmatprep.subr.bf16.mxu0 0
        %573 = vmatpush1.bf16.msra.mxu0 %v533
        %574 = vmatprep.subr.bf16.mxu0 0
        %575 = vmatpush1.bf16.msra.mxu0 %v534
        %576 = vmatprep.subr.bf16.mxu0 0
        %577 = vmatpush1.bf16.msra.mxu0 %v535
        %578 = vmatprep.subr.bf16.mxu0 0
        %579 = vmatpush1.bf16.msra.mxu0 %v536
        %580 = vmatprep.subr.bf16.mxu0 0
        %581 = vmatpush1.bf16.msra.mxu0 %v537
        %582 = vmatprep.subr.bf16.mxu0 0
        %583 = vmatpush1.bf16.msra.mxu0 %v538
        %584 = vmatprep.subr.bf16.mxu0 0
        %585 = vmatpush1.bf16.msra.mxu0 %v539
        %586 = vmatprep.subr.bf16.mxu0 0
        %587 = vmatpush1.bf16.msra.mxu0 %v540
        %588 = vmatprep.subr.bf16.mxu0 0
        %589 = vmatpush1.bf16.msra.mxu0 %v541
        %590 = vmatprep.mubr.bf16.mxu0 %v431
        %591 = vmatmul.mubr.bf16.gmra.mrb[0].mxu0 %v430
        %v592 = vpop.f32.mrb[0].mxu0
        %v593 = vadd.f32 0.0, %v592
        %v594 = vpop.f32.mrb[0].mxu0
        %v595 = vpop.f32.mrb[0].mxu0
        %v596 = vadd.f32 0.0, %v595
        %v597 = vpop.f32.mrb[0].mxu0
        %598 = vmatprep.mubr.bf16.mxu0 %v433
        %599 = vmatmul.mubr.bf16.gmra.mrb[0].mxu0 %v432
        %v600 = vpop.f32.mrb[0].mxu0
        %v601 = vadd.f32 0.0, %v600
        %v602 = vpop.f32.mrb[0].mxu0
        %v603 = vpop.f32.mrb[0].mxu0
        %v604 = vadd.f32 0.0, %v603
        %v605 = vpop.f32.mrb[0].mxu0
        %606 = vmatprep.mubr.bf16.mxu0 %v435
        %607 = vmatmul.mubr.bf16.gmra.mrb[0].mxu0 %v434
        %v608 = vpop.f32.mrb[0].mxu0
        %v609 = vadd.f32 0.0, %v608
        %v610 = vpop.f32.mrb[0].mxu0
        %v611 = vpop.f32.mrb[0].mxu0
        %v612 = vadd.f32 0.0, %v611
        %v613 = vpop.f32.mrb[0].mxu0
        %614 = vmatprep.mubr.bf16.mxu0 %v437
        %615 = vmatmul.mubr.bf16.gmra.mrb[0].mxu0 %v436
        %v616 = vpop.f32.mrb[0].mxu0
        %v617 = vadd.f32 0.0, %v616
        %v618 = vpop.f32.mrb[0].mxu0
        %v619 = vpop.f32.mrb[0].mxu0
        %v620 = vadd.f32 0.0, %v619
        %v621 = vpop.f32.mrb[0].mxu0
        %622 = vmatprep.mubr.bf16.mxu0 %v439
        %623 = vmatmul.mubr.bf16.gmra.mrb[0].mxu0 %v438
        %v624 = vpop.f32.mrb[0].mxu0
        %v625 = vadd.f32 0.0, %v624
        %v626 = vpop.f32.mrb[0].mxu0
        %v627 = vpop.f32.mrb[0].mxu0
        %v628 = vadd.f32 0.0, %v627
        %v629 = vpop.f32.mrb[0].mxu0
        %630 = vmatprep.mubr.bf16.mxu0 %v441
        %631 = vmatmul.mubr.bf16.gmra.mrb[0].mxu0 %v440
        %v632 = vpop.f32.mrb[0].mxu0
        %v633 = vadd.f32 0.0, %v632
        %v634 = vpop.f32.mrb[0].mxu0
        %v635 = vpop.f32.mrb[0].mxu0
        %v636 = vadd.f32 0.0, %v635
        %v637 = vpop.f32.mrb[0].mxu0
        %638 = vmatprep.mubr.bf16.mxu0 %v443
        %639 = vmatmul.mubr.bf16.gmra.mrb[0].mxu0 %v442
        %v640 = vpop.f32.mrb[0].mxu0
        %v641 = vadd.f32 0.0, %v640
        %v642 = vpop.f32.mrb[0].mxu0
        %v643 = vpop.f32.mrb[0].mxu0
        %v644 = vadd.f32 0.0, %v643
        %v645 = vpop.f32.mrb[0].mxu0
        %646 = vmatprep.mubr.bf16.mxu0 %v445
        %647 = vmatmul.mubr.bf16.gmra.mrb[0].mxu0 %v444
        %v648 = vpop.f32.mrb[0].mxu0
        %v649 = vadd.f32 0.0, %v648
        %v650 = vpop.f32.mrb[0].mxu0
        %v651 = vpop.f32.mrb[0].mxu0
        %v652 = vadd.f32 0.0, %v651
        %v653 = vpop.f32.mrb[0].mxu0
        %654 = vdwg.mxu0
        %v655 = vadd.f32 %v318, %v593
        %v656 = vadd.f32 %v319, %v596
        %v657 = vadd.f32 %v320, %v601
        %v658 = vadd.f32 %v321, %v604
        %v659 = vadd.f32 %v322, %v609
        %v660 = vadd.f32 %v323, %v612
        %v661 = vadd.f32 %v324, %v617
        %v662 = vadd.f32 %v325, %v620
        %v663 = vadd.f32 %v326, %v625
        %v664 = vadd.f32 %v327, %v628
        %v665 = vadd.f32 %v328, %v633
        %v666 = vadd.f32 %v329, %v636
        %v667 = vadd.f32 %v330, %v641
        %v668 = vadd.f32 %v331, %v644
        %v669 = vadd.f32 %v332, %v649
        %v670 = vadd.f32 %v333, %v652
        %vm671 = vcmask 523264
        %672 = vst.msk [vmem:[#allocation2] sm:$0xff] %vm671, %v655
        %673 = vst.msk [vmem:[#allocation2 + $0x8] sm:$0xff] %vm671, %v656
        %674 = vst.msk [vmem:[#allocation2 + $0x10] sm:$0xff] %vm671, %v657
        %675 = vst.msk [vmem:[#allocation2 + $0x18] sm:$0xff] %vm671, %v658
        %676 = vst.msk [vmem:[#allocation2 + $0x20] sm:$0xff] %vm671, %v659
        %677 = vst.msk [vmem:[#allocation2 + $0x28] sm:$0xff] %vm671, %v660
        %678 = vst.msk [vmem:[#allocation2 + $0x30] sm:$0xff] %vm671, %v661
        %679 = vst.msk [vmem:[#allocation2 + $0x38] sm:$0xff] %vm671, %v662
        %680 = vst.msk [vmem:[#allocation2 + $0x40] sm:$0xff] %vm671, %v663
        %681 = vst.msk [vmem:[#allocation2 + $0x48] sm:$0xff] %vm671, %v664
        %682 = vst.msk [vmem:[#allocation2 + $0x50] sm:$0xff] %vm671, %v665
        %683 = vst.msk [vmem:[#allocation2 + $0x58] sm:$0xff] %vm671, %v666
        %684 = vst.msk [vmem:[#allocation2 + $0x60] sm:$0xff] %vm671, %v667
        %685 = vst.msk [vmem:[#allocation2 + $0x68] sm:$0xff] %vm671, %v668
        %686 = vst.msk [vmem:[#allocation2 + $0x70] sm:$0xff] %vm671, %v669
        %687 = vst.msk [vmem:[#allocation2 + $0x78] sm:$0xff] %vm671, %v670
        // Predicated region
        $region41: #{tpu_custom_call.1} parent=35 // pred_check
          %p688 = pneg %p297
        $region42: #{tpu_custom_call.1} parent=35 // pred_check_branch
          %690 = sbr.rel (%p688) target = $region44
        $region43: #{tpu_custom_call.1} parent=35 // pred_region
          %v691 = vld [vmem:[#allocation2] sm:$0xff]
          %v692 = vld [vmem:[#allocation2 + $0x8] sm:$0xff]
          %v693 = vld [vmem:[#allocation2 + $0x10] sm:$0xff]
          %v694 = vld [vmem:[#allocation2 + $0x18] sm:$0xff]
          %v695 = vld [vmem:[#allocation2 + $0x20] sm:$0xff]
          %v696 = vld [vmem:[#allocation2 + $0x28] sm:$0xff]
          %v697 = vld [vmem:[#allocation2 + $0x30] sm:$0xff]
          %v698 = vld [vmem:[#allocation2 + $0x38] sm:$0xff]
          %v699 = vld [vmem:[#allocation2 + $0x40] sm:$0xff]
          %v700 = vld [vmem:[#allocation2 + $0x48] sm:$0xff]
          %v701 = vld [vmem:[#allocation2 + $0x50] sm:$0xff]
          %v702 = vld [vmem:[#allocation2 + $0x58] sm:$0xff]
          %v703 = vld [vmem:[#allocation2 + $0x60] sm:$0xff]
          %v704 = vld [vmem:[#allocation2 + $0x68] sm:$0xff]
          %v705 = vld [vmem:[#allocation2 + $0x70] sm:$0xff]
          %v706 = vld [vmem:[#allocation2 + $0x78] sm:$0xff]
          %v707 = vld [vmem:[%s287] sm:$0xf]
          %v708 = vld [vmem:[%s287 + $0x4] sm:$0xf]
          %v709 = vld [vmem:[%s287 + $0x8] sm:$0xf]
          %v710 = vld [vmem:[%s287 + $0xc] sm:$0xf]
          %v711 = vld [vmem:[%s287 + $0x10] sm:$0xf]
          %v712 = vld [vmem:[%s287 + $0x14] sm:$0xf]
          %v713 = vld [vmem:[%s287 + $0x18] sm:$0xf]
          %v714 = vld [vmem:[%s287 + $0x1c] sm:$0xf]
          %v715 = vld [vmem:[%s287 + $0x20] sm:$0xf]
          %v716 = vld [vmem:[%s287 + $0x24] sm:$0xf]
          %v717 = vld [vmem:[%s287 + $0x28] sm:$0xf]
          %v718 = vld [vmem:[%s287 + $0x2c] sm:$0xf]
          %v719 = vld [vmem:[%s287 + $0x30] sm:$0xf]
          %v720 = vld [vmem:[%s287 + $0x34] sm:$0xf]
          %v721 = vld [vmem:[%s287 + $0x38] sm:$0xf]
          %v722 = vld [vmem:[%s287 + $0x3c] sm:$0xf]
          %v723 = vunpack.c.l.bf16 %v707
          %v724 = vunpack.c.l.bf16 %v708
          %v725 = vunpack.c.l.bf16 %v709
          %v726 = vunpack.c.l.bf16 %v710
          %v727 = vunpack.c.l.bf16 %v711
          %v728 = vunpack.c.l.bf16 %v712
          %v729 = vunpack.c.l.bf16 %v713
          %v730 = vunpack.c.l.bf16 %v714
          %v731 = vunpack.c.l.bf16 %v715
          %v732 = vunpack.c.l.bf16 %v716
          %v733 = vunpack.c.l.bf16 %v717
          %v734 = vunpack.c.l.bf16 %v718
          %v735 = vunpack.c.l.bf16 %v719
          %v736 = vunpack.c.l.bf16 %v720
          %v737 = vunpack.c.l.bf16 %v721
          %v738 = vunpack.c.l.bf16 %v722
          %v739 = vld [vmem:[%s293] sm:$0xf]
          %v740 = vld [vmem:[%s293 + $0x4] sm:$0xf]
          %v741 = vld [vmem:[%s293 + $0x8] sm:$0xf]
          %v742 = vld [vmem:[%s293 + $0xc] sm:$0xf]
          %v743 = vld [vmem:[%s293 + $0x10] sm:$0xf]
          %v744 = vld [vmem:[%s293 + $0x14] sm:$0xf]
          %v745 = vld [vmem:[%s293 + $0x18] sm:$0xf]
          %v746 = vld [vmem:[%s293 + $0x1c] sm:$0xf]
          %v747 = vld [vmem:[%s293 + $0x20] sm:$0xf]
          %v748 = vld [vmem:[%s293 + $0x24] sm:$0xf]
          %v749 = vld [vmem:[%s293 + $0x28] sm:$0xf]
          %v750 = vld [vmem:[%s293 + $0x2c] sm:$0xf]
          %v751 = vld [vmem:[%s293 + $0x30] sm:$0xf]
          %v752 = vld [vmem:[%s293 + $0x34] sm:$0xf]
          %v753 = vld [vmem:[%s293 + $0x38] sm:$0xf]
          %v754 = vld [vmem:[%s293 + $0x3c] sm:$0xf]
          %v755 = vunpack.c.l.bf16 %v739
          %v756 = vunpack.c.l.bf16 %v740
          %v757 = vunpack.c.l.bf16 %v741
          %v758 = vunpack.c.l.bf16 %v742
          %v759 = vunpack.c.l.bf16 %v743
          %v760 = vunpack.c.l.bf16 %v744
          %v761 = vunpack.c.l.bf16 %v745
          %v762 = vunpack.c.l.bf16 %v746
          %v763 = vunpack.c.l.bf16 %v747
          %v764 = vunpack.c.l.bf16 %v748
          %v765 = vunpack.c.l.bf16 %v749
          %v766 = vunpack.c.l.bf16 %v750
          %v767 = vunpack.c.l.bf16 %v751
          %v768 = vunpack.c.l.bf16 %v752
          %v769 = vunpack.c.l.bf16 %v753
          %v770 = vunpack.c.l.bf16 %v754
          %v771 = vadd.f32 %v691, %v755
          %v772 = vadd.f32 %v692, %v756
          %v773 = vadd.f32 %v693, %v757
          %v774 = vadd.f32 %v694, %v758
          %v775 = vadd.f32 %v695, %v759
          %v776 = vadd.f32 %v696, %v760
          %v777 = vadd.f32 %v697, %v761
          %v778 = vadd.f32 %v698, %v762
          %v779 = vadd.f32 %v699, %v763
          %v780 = vadd.f32 %v700, %v764
          %v781 = vadd.f32 %v701, %v765
          %v782 = vadd.f32 %v702, %v766
          %v783 = vadd.f32 %v703, %v767
          %v784 = vadd.f32 %v704, %v768
          %v785 = vadd.f32 %v705, %v769
          %v786 = vadd.f32 %v706, %v770
          %v787 = vpack.c.bf16 %v772, %v771
          %v788 = vpack.c.bf16 %v774, %v773
          %v789 = vpack.c.bf16 %v776, %v775
          %v790 = vpack.c.bf16 %v778, %v777
          %v791 = vpack.c.bf16 %v780, %v779
          %v792 = vpack.c.bf16 %v782, %v781
          %v793 = vpack.c.bf16 %v784, %v783
          %v794 = vpack.c.bf16 %v786, %v785
          %v795 = vmul.f32 %v691, %v723
          %v796 = vmul.f32 %v692, %v724
          %v797 = vmul.f32 %v693, %v725
          %v798 = vmul.f32 %v694, %v726
          %v799 = vmul.f32 %v695, %v727
          %v800 = vmul.f32 %v696, %v728
          %v801 = vmul.f32 %v697, %v729
          %v802 = vmul.f32 %v698, %v730
          %v803 = vmul.f32 %v699, %v731
          %v804 = vmul.f32 %v700, %v732
          %v805 = vmul.f32 %v701, %v733
          %v806 = vmul.f32 %v702, %v734
          %v807 = vmul.f32 %v703, %v735
          %v808 = vmul.f32 %v704, %v736
          %v809 = vmul.f32 %v705, %v737
          %v810 = vmul.f32 %v706, %v738
          %v811 = vpack.c.bf16 %v796, %v795
          %v812 = vpack.c.bf16 %v798, %v797
          %v813 = vpack.c.bf16 %v800, %v799
          %v814 = vpack.c.bf16 %v802, %v801
          %v815 = vpack.c.bf16 %v804, %v803
          %v816 = vpack.c.bf16 %v806, %v805
          %v817 = vpack.c.bf16 %v808, %v807
          %v818 = vpack.c.bf16 %v810, %v809
          %827 = vrot.lane.b32.xlu0 %v811, 64
          %v828 = vpop.permute.xlu0 %827
          %829 = vrot.lane.b32.xlu0 %v812, 64
          %v830 = vpop.permute.xlu0 %829
          %831 = vrot.lane.b32.xlu0 %v813, 64
          %v832 = vpop.permute.xlu0 %831
          %833 = vrot.lane.b32.xlu0 %v814, 64
          %v834 = vpop.permute.xlu0 %833
          %835 = vrot.lane.b32.xlu0 %v815, 64
          %v836 = vpop.permute.xlu0 %835
          %837 = vrot.lane.b32.xlu0 %v816, 64
          %v838 = vpop.permute.xlu0 %837
          %839 = vrot.lane.b32.xlu0 %v817, 64
          %v840 = vpop.permute.xlu0 %839
          %841 = vrot.lane.b32.xlu0 %v818, 64
          %v842 = vpop.permute.xlu0 %841
          %v845 = vsel %vm671, %v787, %v828
          %v848 = vsel %vm671, %v788, %v830
          %v851 = vsel %vm671, %v789, %v832
          %v854 = vsel %vm671, %v790, %v834
          %v857 = vsel %vm671, %v791, %v836
          %v860 = vsel %vm671, %v792, %v838
          %v863 = vsel %vm671, %v793, %v840
          %v866 = vsel %vm671, %v794, %v842
          %v875 = vunpack.c.l.b16 %v845
          %v876 = vunpack.c.h.b16 %v845
          %v877 = vunpack.c.l.b16 %v848
          %v878 = vunpack.c.h.b16 %v848
          %v879 = vunpack.c.l.b16 %v851
          %v880 = vunpack.c.h.b16 %v851
          %v881 = vunpack.c.l.b16 %v854
          %v882 = vunpack.c.h.b16 %v854
          %v883 = vunpack.c.l.b16 %v857
          %v884 = vunpack.c.h.b16 %v857
          %v885 = vunpack.c.l.b16 %v860
          %v886 = vunpack.c.h.b16 %v860
          %v887 = vunpack.c.l.b16 %v863
          %v888 = vunpack.c.h.b16 %v863
          %v889 = vunpack.c.l.b16 %v866
          %v890 = vunpack.c.h.b16 %v866
          %v891 = vpack.c.b16 %v875, %v875
          %v892 = vpack.c.b16 %v876, %v876
          %v893 = vpack.c.b16 %v877, %v877
          %v894 = vpack.c.b16 %v878, %v878
          %v895 = vpack.c.b16 %v879, %v879
          %v896 = vpack.c.b16 %v880, %v880
          %v897 = vpack.c.b16 %v881, %v881
          %v898 = vpack.c.b16 %v882, %v882
          %v899 = vpack.c.b16 %v883, %v883
          %v900 = vpack.c.b16 %v884, %v884
          %v901 = vpack.c.b16 %v885, %v885
          %v902 = vpack.c.b16 %v886, %v886
          %v903 = vpack.c.b16 %v887, %v887
          %v904 = vpack.c.b16 %v888, %v888
          %v905 = vpack.c.b16 %v889, %v889
          %v906 = vpack.c.b16 %v890, %v890
          %923 = vst [vmem:[%s264] sm:$0xf] %v891
          %924 = vst [vmem:[%s264 + $0x4] sm:$0xf] %v892
          %925 = vst [vmem:[%s264 + $0x8] sm:$0xf] %v893
          %926 = vst [vmem:[%s264 + $0xc] sm:$0xf] %v894
          %927 = vst [vmem:[%s264 + $0x10] sm:$0xf] %v895
          %928 = vst [vmem:[%s264 + $0x14] sm:$0xf] %v896
          %929 = vst [vmem:[%s264 + $0x18] sm:$0xf] %v897
          %930 = vst [vmem:[%s264 + $0x1c] sm:$0xf] %v898
          %931 = vst [vmem:[%s264 + $0x20] sm:$0xf] %v899
          %932 = vst [vmem:[%s264 + $0x24] sm:$0xf] %v900
          %933 = vst [vmem:[%s264 + $0x28] sm:$0xf] %v901
          %934 = vst [vmem:[%s264 + $0x2c] sm:$0xf] %v902
          %935 = vst [vmem:[%s264 + $0x30] sm:$0xf] %v903
          %936 = vst [vmem:[%s264 + $0x34] sm:$0xf] %v904
          %937 = vst [vmem:[%s264 + $0x38] sm:$0xf] %v905
          %938 = vst [vmem:[%s264 + $0x3c] sm:$0xf] %v906
        $region44: #{tpu_custom_call.1} parent=35 // pred_fallthru
          _
        %s939 = sand.u32 %s144, 1
        %s940 = scalar_lea.sflag [#allocation4], %s939
        %s941 = sand.u32 %s144, 1
        %s942 = smul.addr %s941, 64
        %s943 = scalar_lea.vmem [#allocation3], %s942
        // Predicated region
        $region45: #{tpu_custom_call.1} parent=35 // pred_check
          %p944 = pneg %p154
        $region46: #{tpu_custom_call.1} parent=35 // pred_check_branch
          %946 = sbr.rel (%p944) target = $region48
        $region47: #{tpu_custom_call.1} parent=35 // pred_region
          %s947 = smul.u32 16, %s22
          %s949 = ssub.s32 1024, 1024
          %950 = vsyncadd %s940, %s949
          %s951 = smul.addr %s947, 64
          %s952 = scalar_lea.hbm %s4, %s951
          %s953 = sshll.u32 %s943, 4
          %s954 = int_to_ptr.vmem [resolvable:$true] %s953
          %959 = dma.vmem_to_hbm [thread:$0]  %s954, 1024, %s952, %s940, 64, 64, 4
        $region48: #{tpu_custom_call.1} parent=35 // pred_fallthru
          _
      $region36: #{tpu_custom_call.1} parent=5 // pred_fallthru
        _
      %p960 = scmp.le.s32.totalorder 2, %s13
      // Predicated region
      $region49: #{tpu_custom_call.1} parent=5 // pred_check
        %p961 = pneg %p960
      $region50: #{tpu_custom_call.1} parent=5 // pred_check_branch
        %963 = sbr.rel (%p961) target = $region52
      $region51: #{tpu_custom_call.1} parent=5 // pred_region
        %s964 = ssub.s32 %s13, 2
        // Predicated region
        $region53: #{tpu_custom_call.1} parent=51 // pred_check
          %p965 = pneg %p160
        $region54: #{tpu_custom_call.1} parent=51 // pred_check_branch
          %967 = sbr.rel (%p965) target = $region56
        $region55: #{tpu_custom_call.1} parent=51 // pred_region
          %s968 = sand.u32 %s145, 1
          %s969 = scalar_lea.sflag [#allocation4], %s968
          %s970 = sand.u32 %s145, 1
          %s971 = smul.addr %s970, 64
          %s972 = scalar_lea.vmem [#allocation3], %s971
          %973 = dma.done %s969, 1024
        $region56: #{tpu_custom_call.1} parent=51 // pred_fallthru
          _
      $region52: #{tpu_custom_call.1} parent=5 // pred_fallthru
        _
    $region6: #{tpu_custom_call.1} parent=1 // loop_footer
      %s17 = sadd.s32 1, %s13
    $region7: #{tpu_custom_call.1} parent=1 // loop_footer_branch
      %12 = sbr.rel target = $region3
    $region8: #{tpu_custom_call.1} parent=1 // loop_exit
      _
    %974 = vsyncpa [#allocation4], 1
    %s975 = scalar_lea.sflag [#allocation4], 1
    %976 = vsyncpa %s975, 1

</llo_original>
